<compile_context>
chip_gen: v7x
topology: tpu7x:2x2x1
jax: 0.10.0
libtpu: 0.0.40
codegen_flags: <defaults>
</compile_context>

<pallas_src>
import functools

import jax
import jax.numpy as jnp
from jax import lax
from jax.experimental import pallas as pl
from jax.experimental.pallas import tpu as pltpu

EPS = 1e-5
LANES = 128


def _round_up(n, m):
    return (n + m - 1) // m * m


def pack_params(params, dim_in, dim_h1=32, dim_h2=8):
    """Pack parameters into two lane-aligned slabs (built once, outside the
    per-call path).

    wslab (bf16): MXU operands, stored transposed.
        rows [0, dim_h1)                cols [0, dim_in)  -> w1^T
        rows [dim_h1, dim_h1+dim_h2)    cols [0, dim_h1)  -> w2^T
    vslab (f32): per-feature columns (features live on sublanes).
        col 0: gamma1   col 1: beta1   col 2: gamma2   col 3: beta2
        col 4: w3       col 5: b3
    b1/b2 are intentionally NOT packed: cancelled by training-mode BN.
    """
    w_rows = _round_up(dim_h1 + dim_h2, 16)           # bf16 sublane packing
    wslab = jnp.zeros((w_rows, LANES), jnp.bfloat16)
    wslab = wslab.at[0:dim_h1, 0:dim_in].set(params["w1"].T.astype(jnp.bfloat16))
    wslab = wslab.at[dim_h1:dim_h1 + dim_h2, 0:dim_h1].set(
        params["w2"].T.astype(jnp.bfloat16))

    v_rows = _round_up(max(dim_h1, dim_h2), 8)
    vslab = jnp.zeros((v_rows, LANES), jnp.float32)
    vslab = vslab.at[0:dim_h1, 0].set(params["g1"][0])
    vslab = vslab.at[0:dim_h1, 1].set(params["be1"][0])
    vslab = vslab.at[0:dim_h2, 2].set(params["g2"][0])
    vslab = vslab.at[0:dim_h2, 3].set(params["be2"][0])
    vslab = vslab.at[0:dim_h2, 4].set(params["w3"][:, 0])
    vslab = vslab.at[0, 5].set(params["b3"][0, 0])
    return wslab, vslab


def satov_kernel(xt_ref, w_ref, v_ref, o_ref, *, dim_in, dim_h1, dim_h2, inv_b):
    xt = xt_ref[...]                                    # (dim_in, B) f32, x.float().T

    # Static views into the packed slabs (2 tiny param DMAs total).
    w1t = w_ref[0:dim_h1, 0:dim_in]                     # (32, dim_in) bf16
    w2t = w_ref[dim_h1:dim_h1 + dim_h2, 0:dim_h1]       # (8, 32)      bf16
    g1  = v_ref[0:dim_h1, 0:1]                          # (32, 1) f32
    be1 = v_ref[0:dim_h1, 1:2]
    g2  = v_ref[0:dim_h2, 2:3]                          # (8, 1)
    be2 = v_ref[0:dim_h2, 3:4]
    w3  = v_ref[0:dim_h2, 4:5]                          # (8, 1)
    b3  = v_ref[0:1, 5:6]                               # (1, 1)

    def bn_relu(z, gamma, beta):
        # Training-mode BN over the batch (= lane) axis, folded into a single
        # per-feature scale/shift:  h = max(z*s + t, 0).
        # Single-pass variance with a non-negativity guard; fine at this scale
        # (switch to two-pass if |mean| >> std or B grows large).
        mean = jnp.sum(z, axis=1, keepdims=True) * inv_b
        ex2 = jnp.sum(z * z, axis=1, keepdims=True) * inv_b
        var = jnp.maximum(ex2 - mean * mean, 0.0)
        s = gamma * lax.rsqrt(var + EPS)                # (F, 1)
        t = beta - mean * s                             # (F, 1)
        return jnp.maximum(z * s + t, 0.0)

    # Layer 1: Linear (bias cancelled by BN) -> BN -> ReLU.  bf16 MXU, f32 acc.
    z1 = jnp.dot(w1t, xt.astype(jnp.bfloat16),
                 preferred_element_type=jnp.float32)    # (32, B)
    h1 = bn_relu(z1, g1, be1)

    # Layer 2: Linear (bias cancelled by BN) -> BN -> ReLU.
    z2 = jnp.dot(w2t, h1.astype(jnp.bfloat16),
                 preferred_element_type=jnp.float32)    # (8, B)
    h2 = bn_relu(z2, g2, be2)

    # Layer 3: 8 -> 1 projection on the VPU/XLU (mul + sublane reduce) + bias.
    # Lane-dense (1, B) row store.
    o_ref[...] = jnp.sum(h2 * w3, axis=0, keepdims=True) + b3


def satov_forward(x, wslab, vslab, dim_h1=32, dim_h2=8):
    """x: [B, dimIn]. Returns [B, 1] float32."""
    B, dim_in = x.shape
    # x.float() + transpose in the wrapper: batch goes on the lane axis so the
    # matmuls, BN reductions and the final store are all lane-dense.
    xt = x.astype(jnp.float32).T                        # (dim_in, B)

    kernel = functools.partial(
        satov_kernel, dim_in=dim_in, dim_h1=dim_h1, dim_h2=dim_h2,
        inv_b=1.0 / float(B))

    out_row = pl.pallas_call(
        kernel,
        out_shape=jax.ShapeDtypeStruct((1, B), jnp.float32),
        # No grid: one kernel invocation, whole-array operands resident in
        # VMEM -- no degenerate single-step pipeline / double buffering.
        in_specs=[
            pl.BlockSpec(memory_space=pltpu.MemorySpace.VMEM),
            pl.BlockSpec(memory_space=pltpu.MemorySpace.VMEM),
            pl.BlockSpec(memory_space=pltpu.MemorySpace.VMEM),
        ],
        out_specs=pl.BlockSpec(memory_space=pltpu.MemorySpace.VMEM),
        compiler_params=pltpu.CompilerParams(
            vmem_limit_bytes=2 * 1024 * 1024),
    )(xt, wslab, vslab)

    return out_row.reshape(B, 1)                        # row -> column (layout only)


def make_forward(params, dim_in, dim_h1=32, dim_h2=8):
    """Pack parameters ONCE and return a jitted forward closure (the packing
    is hoisted out of the per-call path)."""
    wslab, vslab = pack_params(params, dim_in, dim_h1, dim_h2)

    @jax.jit
    def forward(x):
        return satov_forward(x, wslab, vslab, dim_h1, dim_h2)

    return forward


def init_params(key, dim_in, dim_h1=32, dim_h2=8, dim_out=1):
    """PyTorch-style init (uniform(-1/sqrt(fan_in), 1/sqrt(fan_in)))."""
    ks = jax.random.split(key, 6)

    def lin(kw, kb, fan_in, fan_out):
        bound = 1.0 / jnp.sqrt(fan_in)
        w = jax.random.uniform(kw, (fan_in, fan_out), jnp.float32, -bound, bound)
        b = jax.random.uniform(kb, (1, fan_out), jnp.float32, -bound, bound)
        return w, b

    w1, b1 = lin(ks[0], ks[1], dim_in, dim_h1)
    w2, b2 = lin(ks[2], ks[3], dim_h1, dim_h2)
    w3, b3 = lin(ks[4], ks[5], dim_h2, dim_out)
    return {
        "w1": w1, "b1": b1,
        "g1": jnp.ones((1, dim_h1), jnp.float32), "be1": jnp.zeros((1, dim_h1), jnp.float32),
        "w2": w2, "b2": b2,
        "g2": jnp.ones((1, dim_h2), jnp.float32), "be2": jnp.zeros((1, dim_h2), jnp.float32),
        "w3": w3, "b3": b3,
    }


def reference_forward(x, p):
    """Pure-JAX f32 reference of the PyTorch forward (training-mode BN, WITH b1/b2)."""
    x = x.astype(jnp.float32)

    def bn_relu(h, g, b):
        m = jnp.mean(h, axis=0, keepdims=True)
        v = jnp.mean((h - m) ** 2, axis=0, keepdims=True)
        return jnp.maximum((h - m) / jnp.sqrt(v + EPS) * g + b, 0.0)

    h = bn_relu(x @ p["w1"] + p["b1"], p["g1"], p["be1"])
    h = bn_relu(h @ p["w2"] + p["b2"], p["g2"], p["be2"])
    return h @ p["w3"] + p["b3"]


if __name__ == "__main__":
    state_size, action_size = 6, 2          # dimIn = 8
    batch = 16
    dim_in = state_size + action_size

    key = jax.random.PRNGKey(0)
    kx, kp = jax.random.split(key)
    x = jax.random.normal(kx, (batch, dim_in), jnp.float32)
    params = init_params(kp, dim_in)

    forward = make_forward(params, dim_in)   # params packed once, closed over
    out = jax.block_until_ready(forward(x))

    ref = reference_forward(x, params)
    assert out.shape == (batch, 1)
    # Kernel feeds bf16 operands to the MXU (f32 accumulation); tolerance is
    # set for the bf16-vs-f32 mantissa gap (BN re-normalizes each layer).
    assert jnp.allclose(out, ref, atol=5e-2, rtol=5e-2), (out, ref)

    print("KERNEL_OK")
</pallas_src>

<mosaic_0001>
module attributes {stable_mosaic.version = 11 : i64} {
  func.func @satov_kernel(%arg0: memref<8x16xf32, #tpu.memory_space<vmem>>, %arg1: memref<48x128xbf16, #tpu.memory_space<vmem>>, %arg2: memref<32x128xf32, #tpu.memory_space<vmem>>, %arg3: memref<1x16xf32, #tpu.memory_space<vmem>>) attributes {dimension_semantics = [], scalar_prefetch = 0 : i64, scratch_operands = 0 : i64, tpu.core_type = #tpu.core_type<tc>} {
    %c0 = arith.constant 0 : index
    %c0_0 = arith.constant 0 : index
    %0 = vector.load %arg0[%c0, %c0_0] : memref<8x16xf32, #tpu.memory_space<vmem>>, vector<8x16xf32>
    %c0_1 = arith.constant 0 : index
    %c0_2 = arith.constant 0 : index
    %1 = vector.load %arg1[%c0_1, %c0_2] : memref<48x128xbf16, #tpu.memory_space<vmem>>, vector<32x8xbf16>
    %c32 = arith.constant 32 : index
    %c0_3 = arith.constant 0 : index
    %2 = vector.load %arg1[%c32, %c0_3] : memref<48x128xbf16, #tpu.memory_space<vmem>>, vector<8x32xbf16>
    %c0_4 = arith.constant 0 : index
    %c0_5 = arith.constant 0 : index
    %3 = vector.load %arg2[%c0_4, %c0_5] : memref<32x128xf32, #tpu.memory_space<vmem>>, vector<32x1xf32>
    %c0_6 = arith.constant 0 : index
    %c1 = arith.constant 1 : index
    %4 = vector.load %arg2[%c0_6, %c1] : memref<32x128xf32, #tpu.memory_space<vmem>>, vector<32x1xf32>
    %c0_7 = arith.constant 0 : index
    %c2 = arith.constant 2 : index
    %5 = vector.load %arg2[%c0_7, %c2] : memref<32x128xf32, #tpu.memory_space<vmem>>, vector<8x1xf32>
    %c0_8 = arith.constant 0 : index
    %c3 = arith.constant 3 : index
    %6 = vector.load %arg2[%c0_8, %c3] : memref<32x128xf32, #tpu.memory_space<vmem>>, vector<8x1xf32>
    %c0_9 = arith.constant 0 : index
    %c4 = arith.constant 4 : index
    %7 = vector.load %arg2[%c0_9, %c4] : memref<32x128xf32, #tpu.memory_space<vmem>>, vector<8x1xf32>
    %c0_10 = arith.constant 0 : index
    %c5 = arith.constant 5 : index
    %8 = vector.load %arg2[%c0_10, %c5] : memref<32x128xf32, #tpu.memory_space<vmem>>, vector<1x1xf32>
    %9 = arith.truncf %0 : vector<8x16xf32> to vector<8x16xbf16>
    %cst = arith.constant dense<0.000000e+00> : vector<32x16xf32>
    %10 = tpu.matmul %1, %9, %cst {dimension_numbers = #tpu.dot_dimension_numbers<[1], [0], [0], [1], [0, 0, 1, 1], [], []>} : vector<32x8xbf16>, vector<8x16xbf16>, vector<32x16xf32> -> vector<32x16xf32>
    %cst_11 = arith.constant dense<0.000000e+00> : vector<32xf32>
    %11 = vector.multi_reduction <add>, %10, %cst_11 [1] : vector<32x16xf32> to vector<32xf32>
    %12 = vector.shape_cast %11 : vector<32xf32> to vector<32x1xf32>
    %cst_12 = arith.constant 6.250000e-02 : f32
    %13 = vector.broadcast %cst_12 : f32 to vector<32x1xf32>
    %14 = arith.mulf %12, %13 : vector<32x1xf32>
    %15 = arith.mulf %10, %10 : vector<32x16xf32>
    %cst_13 = arith.constant dense<0.000000e+00> : vector<32xf32>
    %16 = vector.multi_reduction <add>, %15, %cst_13 [1] : vector<32x16xf32> to vector<32xf32>
    %17 = vector.shape_cast %16 : vector<32xf32> to vector<32x1xf32>
    %cst_14 = arith.constant 6.250000e-02 : f32
    %18 = vector.broadcast %cst_14 : f32 to vector<32x1xf32>
    %19 = arith.mulf %17, %18 : vector<32x1xf32>
    %20 = arith.mulf %14, %14 : vector<32x1xf32>
    %21 = arith.subf %19, %20 : vector<32x1xf32>
    %cst_15 = arith.constant 0.000000e+00 : f32
    %22 = vector.broadcast %cst_15 : f32 to vector<32x1xf32>
    %23 = arith.maximumf %21, %22 : vector<32x1xf32>
    %cst_16 = arith.constant 9.99999974E-6 : f32
    %24 = vector.broadcast %cst_16 : f32 to vector<32x1xf32>
    %25 = arith.addf %23, %24 : vector<32x1xf32>
    %26 = math.rsqrt %25 : vector<32x1xf32>
    %27 = arith.mulf %3, %26 : vector<32x1xf32>
    %28 = arith.mulf %14, %27 : vector<32x1xf32>
    %29 = arith.subf %4, %28 : vector<32x1xf32>
    %30 = vector.broadcast %27 : vector<32x1xf32> to vector<32x16xf32>
    %31 = arith.mulf %10, %30 : vector<32x16xf32>
    %32 = vector.broadcast %29 : vector<32x1xf32> to vector<32x16xf32>
    %33 = arith.addf %31, %32 : vector<32x16xf32>
    %cst_17 = arith.constant 0.000000e+00 : f32
    %34 = vector.broadcast %cst_17 : f32 to vector<32x16xf32>
    %35 = arith.maximumf %33, %34 : vector<32x16xf32>
    %36 = arith.truncf %35 : vector<32x16xf32> to vector<32x16xbf16>
    %cst_18 = arith.constant dense<0.000000e+00> : vector<8x16xf32>
    %37 = tpu.matmul %2, %36, %cst_18 {dimension_numbers = #tpu.dot_dimension_numbers<[1], [0], [0], [1], [0, 0, 1, 1], [], []>} : vector<8x32xbf16>, vector<32x16xbf16>, vector<8x16xf32> -> vector<8x16xf32>
    %cst_19 = arith.constant dense<0.000000e+00> : vector<8xf32>
    %38 = vector.multi_reduction <add>, %37, %cst_19 [1] : vector<8x16xf32> to vector<8xf32>
    %39 = vector.shape_cast %38 : vector<8xf32> to vector<8x1xf32>
    %cst_20 = arith.constant 6.250000e-02 : f32
    %40 = vector.broadcast %cst_20 : f32 to vector<8x1xf32>
    %41 = arith.mulf %39, %40 : vector<8x1xf32>
    %42 = arith.mulf %37, %37 : vector<8x16xf32>
    %cst_21 = arith.constant dense<0.000000e+00> : vector<8xf32>
    %43 = vector.multi_reduction <add>, %42, %cst_21 [1] : vector<8x16xf32> to vector<8xf32>
    %44 = vector.shape_cast %43 : vector<8xf32> to vector<8x1xf32>
    %cst_22 = arith.constant 6.250000e-02 : f32
    %45 = vector.broadcast %cst_22 : f32 to vector<8x1xf32>
    %46 = arith.mulf %44, %45 : vector<8x1xf32>
    %47 = arith.mulf %41, %41 : vector<8x1xf32>
    %48 = arith.subf %46, %47 : vector<8x1xf32>
    %cst_23 = arith.constant 0.000000e+00 : f32
    %49 = vector.broadcast %cst_23 : f32 to vector<8x1xf32>
    %50 = arith.maximumf %48, %49 : vector<8x1xf32>
    %cst_24 = arith.constant 9.99999974E-6 : f32
    %51 = vector.broadcast %cst_24 : f32 to vector<8x1xf32>
    %52 = arith.addf %50, %51 : vector<8x1xf32>
    %53 = math.rsqrt %52 : vector<8x1xf32>
    %54 = arith.mulf %5, %53 : vector<8x1xf32>
    %55 = arith.mulf %41, %54 : vector<8x1xf32>
    %56 = arith.subf %6, %55 : vector<8x1xf32>
    %57 = vector.broadcast %54 : vector<8x1xf32> to vector<8x16xf32>
    %58 = arith.mulf %37, %57 : vector<8x16xf32>
    %59 = vector.broadcast %56 : vector<8x1xf32> to vector<8x16xf32>
    %60 = arith.addf %58, %59 : vector<8x16xf32>
    %cst_25 = arith.constant 0.000000e+00 : f32
    %61 = vector.broadcast %cst_25 : f32 to vector<8x16xf32>
    %62 = arith.maximumf %60, %61 : vector<8x16xf32>
    %63 = vector.broadcast %7 : vector<8x1xf32> to vector<8x16xf32>
    %64 = arith.mulf %62, %63 : vector<8x16xf32>
    %cst_26 = arith.constant dense<0.000000e+00> : vector<16xf32>
    %65 = vector.multi_reduction <add>, %64, %cst_26 [0] : vector<8x16xf32> to vector<16xf32>
    %66 = vector.shape_cast %65 : vector<16xf32> to vector<1x16xf32>
    %67 = vector.broadcast %8 : vector<1x1xf32> to vector<1x16xf32>
    %68 = arith.addf %66, %67 : vector<1x16xf32>
    %c0_27 = arith.constant 0 : index
    %c0_28 = arith.constant 0 : index
    %69 = vector.load %arg3[%c0_27, %c0_28] : memref<1x16xf32, #tpu.memory_space<vmem>>, vector<1x16xf32>
    tpu.vector_store %arg3[%c0_27, %c0_28], %68 {strides = array<i32>} : memref<1x16xf32, #tpu.memory_space<vmem>>, vector<1x16xf32>,
    return
  }
}

</mosaic_0001>

<llo_original>
// kernel: forward.1
$region0: #{forward.1}
  #allocation0 [shape = 'u32[]', space=smem, size = 0x4, offset = 0x4, fixed_abs, tag = 'smem constant byte address 0x4 - core index']
  #allocation1 [shape = 'u32[144,128]{1,0:T(1,128)}', space=vmem, size = 0x12000, scoped, tag = 'internal scratch']
  %s0 = inlined_call_operand.hbm [shape: f32[8,16], index: 0, kind: input, shape index: {}]
  %s1 = inlined_call_operand.hbm [shape: bf16[48,128], index: 1, kind: input, shape index: {}]
  %s2 = inlined_call_operand.hbm [shape: f32[32,128], index: 2, kind: input, shape index: {}]
  %s3 = inlined_call_operand.hbm [shape: f32[1,16], index: 3, kind: output, shape index: {}]
  %s4 = sld [smem:[#allocation0]]
  $region34: #{forward.1} parent=0
    _
  %s6 = ssub.s32 1, %s4
  %s7 = scalar_select 0, %s6, %s4
  $region1: #{forward.1} parent=0
    #allocation2 [shape = 'u8[4096]{0}', space=vmem, size = 0x1000, scoped, tag = 'input window, operand 0, single buffered']
    #allocation3 [shape = 's32[1]{0}', space=sflag, size = 0x4, scoped, tag = 'scoped memory for forward.1']
    #allocation4 [shape = 's32[1]{0}', space=sflag, size = 0x4, scoped, tag = 'scoped memory for forward.1']
    #allocation5 [shape = 'u8[12288]{0}', space=vmem, size = 0x3000, scoped, tag = 'input window, operand 1, single buffered']
    #allocation6 [shape = 's32[1]{0}', space=sflag, size = 0x4, scoped, tag = 'scoped memory for forward.1']
    #allocation7 [shape = 'u8[16384]{0}', space=vmem, size = 0x4000, scoped, tag = 'input window, operand 2, single buffered']
    #allocation8 [shape = 'u8[512]{0}', space=vmem, size = 0x400, scoped, tag = 'output window, operand 0, single buffered']
    %8 = vsyncpa [#allocation3], 0
    %9 = vsyncpa [#allocation6], 0
    %10 = vsyncpa [#allocation4], 0
    // Predicated region
    $region2: #{forward.1} parent=1 // pred_check
      _
    $region3: #{forward.1} parent=1 // pred_check_branch
      %12 = sbr.rel (0) target = $region5
    $region4: #{forward.1} parent=1 // pred_region
      %s14 = ssub.s32 128, 128
      %15 = vsyncadd [#allocation3], %s14
      %s17 = sshll.u32 [#allocation2], 4
      %s18 = int_to_ptr.vmem [resolvable:$true] %s17
      %20 = dma.hbm_to_vmem [thread:$0]  %s0, 128, %s18, [#allocation3]
    $region5: #{forward.1} parent=1 // pred_fallthru
      _
    // Predicated region
    $region6: #{forward.1} parent=1 // pred_check
      _
    $region7: #{forward.1} parent=1 // pred_check_branch
      %22 = sbr.rel (0) target = $region9
    $region8: #{forward.1} parent=1 // pred_region
      %s24 = ssub.s32 384, 384
      %25 = vsyncadd [#allocation6], %s24
      %s26 = sshll.u32 [#allocation5], 4
      %s27 = int_to_ptr.vmem [resolvable:$true] %s26
      %32 = dma.hbm_to_vmem [thread:$0]  %s1, 384, %s27, [#allocation6], 64, 64, 4
    $region9: #{forward.1} parent=1 // pred_fallthru
      _
    // Predicated region
    $region10: #{forward.1} parent=1 // pred_check
      _
    $region11: #{forward.1} parent=1 // pred_check_branch
      %34 = sbr.rel (0) target = $region13
    $region12: #{forward.1} parent=1 // pred_region
      %s36 = ssub.s32 512, 512
      %37 = vsyncadd [#allocation6], %s36
      %s38 = sshll.u32 [#allocation7], 4
      %s39 = int_to_ptr.vmem [resolvable:$true] %s38
      %44 = dma.hbm_to_vmem [thread:$0]  %s2, 512, %s39, [#allocation6], 128, 128, 8
    $region13: #{forward.1} parent=1 // pred_fallthru
      _
    // Predicated region
    $region14: #{forward.1} parent=1 // pred_check
      _
    $region15: #{forward.1} parent=1 // pred_check_branch
      %46 = sbr.rel (0) target = $region17
    $region16: #{forward.1} parent=1 // pred_region
      %47 = dma.done [#allocation3], 128
    $region17: #{forward.1} parent=1 // pred_fallthru
      _
    // Predicated region
    $region18: #{forward.1} parent=1 // pred_check
      _
    $region19: #{forward.1} parent=1 // pred_check_branch
      %49 = sbr.rel (0) target = $region21
    $region20: #{forward.1} parent=1 // pred_region
      %50 = dma.done [#allocation6], 384
    $region21: #{forward.1} parent=1 // pred_fallthru
      _
    // Predicated region
    $region22: #{forward.1} parent=1 // pred_check
      _
    $region23: #{forward.1} parent=1 // pred_check_branch
      %52 = sbr.rel (0) target = $region25
    $region24: #{forward.1} parent=1 // pred_region
      %53 = dma.done [#allocation6], 512
    $region25: #{forward.1} parent=1 // pred_fallthru
      _
    %v55 = vld [vmem:[#allocation2] sm:$0xff]
    %v56 = vld [vmem:[#allocation5] sm:$0xf]
    %v57 = vld [vmem:[#allocation5 + $0x4] sm:$0xf]
    %v58 = vld [vmem:[#allocation5 + $0x8] sm:$0xf]
    %v59 = vld [vmem:[#allocation5 + $0xc] sm:$0xf]
    %v60 = vld [vmem:[#allocation5 + $0x10] sm:$0xf]
    %v61 = vld [vmem:[#allocation7] sm:$0xff]
    %v62 = vld [vmem:[#allocation7 + $0x8] sm:$0xff]
    %v63 = vld [vmem:[#allocation7 + $0x10] sm:$0xff]
    %v64 = vld [vmem:[#allocation7 + $0x18] sm:$0xff]
    %v65 = vld [vmem:[#allocation7] sm:$0xff]
    %v66 = vld [vmem:[#allocation7] sm:$0x1]
    %v67 = vpack.c.bf16 %v55, %v55
    %v72 = vunpack.c.l.b16 %v56
    %v73 = vunpack.c.l.b16 %v57
    %v74 = vunpack.c.l.b16 %v58
    %v75 = vunpack.c.l.b16 %v59
    %v76 = vpack.c.b16 %v73, %v72
    %v77 = vpack.c.b16 %v75, %v74
    %vm78 = vcmask 64512
    %v80 = vsel %vm78, %v76, 0
    %v83 = vsel %vm78, %v77, 0
    %vm85 = vcmask 1043456
    %v87 = vsel %vm85, %v67, 0
    %89 = vmatprep.subr.bf16.mxu0 0
    %90 = vmatpush1.bf16.msra.mxu0 %v87
    %91 = vmatprep.subr.bf16.mxu0 0
    %92 = vmatpush1.bf16.msra.mxu0 0
    %93 = vmatprep.subr.bf16.mxu0 0
    %94 = vmatpush1.bf16.msra.mxu0 0
    %95 = vmatprep.subr.bf16.mxu0 0
    %96 = vmatpush1.bf16.msra.mxu0 0
    %97 = vmatprep.subr.bf16.mxu0 0
    %98 = vmatpush1.bf16.msra.mxu0 0
    %99 = vmatprep.subr.bf16.mxu0 0
    %100 = vmatpush1.bf16.msra.mxu0 0
    %101 = vmatprep.subr.bf16.mxu0 0
    %102 = vmatpush1.bf16.msra.mxu0 0
    %103 = vmatprep.subr.bf16.mxu0 0
    %104 = vmatpush1.bf16.msra.mxu0 0
    %105 = vmatprep.subr.bf16.mxu0 0
    %106 = vmatpush1.bf16.msra.mxu0 0
    %107 = vmatprep.subr.bf16.mxu0 0
    %108 = vmatpush1.bf16.msra.mxu0 0
    %109 = vmatprep.subr.bf16.mxu0 0
    %110 = vmatpush1.bf16.msra.mxu0 0
    %111 = vmatprep.subr.bf16.mxu0 0
    %112 = vmatpush1.bf16.msra.mxu0 0
    %113 = vmatprep.subr.bf16.mxu0 0
    %114 = vmatpush1.bf16.msra.mxu0 0
    %115 = vmatprep.subr.bf16.mxu0 0
    %116 = vmatpush1.bf16.msra.mxu0 0
    %117 = vmatprep.subr.bf16.mxu0 0
    %118 = vmatpush1.bf16.msra.mxu0 0
    %119 = vmatprep.subr.bf16.mxu0 0
    %120 = vmatpush1.bf16.msra.mxu0 0
    %121 = vmatprep.mubr.bf16.mxu0 0
    %122 = vmatmul.mubr.bf16.gmra.mrb[0].mxu0 %v80
    %v123 = vpop.f32.mrb[0].mxu0
    %v124 = vadd.f32 0.0, %v123
    %v125 = vpop.f32.mrb[0].mxu0
    %v126 = vpop.f32.mrb[0].mxu0
    %v127 = vadd.f32 0.0, %v126
    %v128 = vpop.f32.mrb[0].mxu0
    %129 = vmatprep.mubr.bf16.mxu0 0
    %130 = vmatmul.mubr.bf16.gmra.mrb[0].mxu0 %v83
    %v131 = vpop.f32.mrb[0].mxu0
    %v132 = vadd.f32 0.0, %v131
    %v133 = vpop.f32.mrb[0].mxu0
    %v134 = vpop.f32.mrb[0].mxu0
    %v135 = vadd.f32 0.0, %v134
    %v136 = vpop.f32.mrb[0].mxu0
    %137 = vdwg.mxu0
    %vm138 = vcmask 130048
    %v139 = vsel %vm138, %v124, 0.0
    %140 = vadd.xlane.f32.xlu0 %v139
    %v141 = vpop.xlane.xlu0 %140
    %v142 = vsel %vm138, %v127, 0.0
    %143 = vadd.xlane.f32.xlu0 %v142
    %v144 = vpop.xlane.xlu0 %143
    %v145 = vsel %vm138, %v132, 0.0
    %146 = vadd.xlane.f32.xlu0 %v145
    %v147 = vpop.xlane.xlu0 %146
    %v148 = vsel %vm138, %v135, 0.0
    %149 = vadd.xlane.f32.xlu0 %v148
    %v150 = vpop.xlane.xlu0 %149
    %v151 = vmul.f32 %v141, 0.0625
    %v152 = vmul.f32 %v144, 0.0625
    %v153 = vmul.f32 %v147, 0.0625
    %v154 = vmul.f32 %v150, 0.0625
    %v155 = vmul.f32 %v124, %v124
    %v156 = vmul.f32 %v127, %v127
    %v157 = vmul.f32 %v132, %v132
    %v158 = vmul.f32 %v135, %v135
    %v159 = vsel %vm138, %v155, 0.0
    %160 = vadd.xlane.f32.xlu0 %v159
    %v161 = vpop.xlane.xlu0 %160
    %v162 = vsel %vm138, %v156, 0.0
    %163 = vadd.xlane.f32.xlu0 %v162
    %v164 = vpop.xlane.xlu0 %163
    %v165 = vsel %vm138, %v157, 0.0
    %166 = vadd.xlane.f32.xlu0 %v165
    %v167 = vpop.xlane.xlu0 %166
    %v168 = vsel %vm138, %v158, 0.0
    %169 = vadd.xlane.f32.xlu0 %v168
    %v170 = vpop.xlane.xlu0 %169
    %v171 = vmul.f32 %v161, 0.0625
    %v172 = vmul.f32 %v164, 0.0625
    %v173 = vmul.f32 %v167, 0.0625
    %v174 = vmul.f32 %v170, 0.0625
    %v175 = vmul.f32 %v151, %v151
    %v176 = vmul.f32 %v152, %v152
    %v177 = vmul.f32 %v153, %v153
    %v178 = vmul.f32 %v154, %v154
    %v179 = vsub.f32 %v171, %v175
    %v180 = vsub.f32 %v172, %v176
    %v181 = vsub.f32 %v173, %v177
    %v182 = vsub.f32 %v174, %v178
    %v183 = vmax.f32 %v179, 0.0
    %v184 = vmax.f32 %v180, 0.0
    %v185 = vmax.f32 %v181, 0.0
    %v186 = vmax.f32 %v182, 0.0
    %v187 = vadd.f32 %v183, 1e-05
    %v188 = vadd.f32 %v184, 1e-05
    %v189 = vadd.f32 %v185, 1e-05
    %v190 = vadd.f32 %v186, 1e-05
    %v191 = vrsqrt.pop %v187
    %v192 = vrsqrt.pop %v188
    %v193 = vrsqrt.pop %v189
    %v194 = vrsqrt.pop %v190
    %v195 = vmul.f32 %v61, %v191
    %v196 = vmul.f32 %v62, %v192
    %v197 = vmul.f32 %v63, %v193
    %v198 = vmul.f32 %v64, %v194
    %v199 = vmul.f32 %v151, %v195
    %v200 = vmul.f32 %v152, %v196
    %v201 = vmul.f32 %v153, %v197
    %v202 = vmul.f32 %v154, %v198
    %207 = vrot.lane.b32.xlu0 %v199, 1
    %v208 = vpop.permute.xlu0 %207
    %209 = vrot.lane.b32.xlu0 %v200, 1
    %v210 = vpop.permute.xlu0 %209
    %211 = vrot.lane.b32.xlu0 %v201, 1
    %v212 = vpop.permute.xlu0 %211
    %213 = vrot.lane.b32.xlu0 %v202, 1
    %v214 = vpop.permute.xlu0 %213
    %v219 = vsub.f32 %v61, %v208
    %v220 = vsub.f32 %v62, %v210
    %v221 = vsub.f32 %v63, %v212
    %v222 = vsub.f32 %v64, %v214
    %224 = vset.pattern.permute.xlu0 0
    %225 = vperm.xlu0 %224, %v195
    %v226 = vpop.permute.xlu0 %225
    %229 = vset.pattern.permute.xlu0 0
    %230 = vperm.xlu0 %229, %v196
    %v231 = vpop.permute.xlu0 %230
    %234 = vset.pattern.permute.xlu0 0
    %235 = vperm.xlu0 %234, %v197
    %v236 = vpop.permute.xlu0 %235
    %239 = vset.pattern.permute.xlu0 0
    %240 = vperm.xlu0 %239, %v198
    %v241 = vpop.permute.xlu0 %240
    %v243 = vmul.f32 %v124, %v226
    %v244 = vmul.f32 %v127, %v231
    %v245 = vmul.f32 %v132, %v236
    %v246 = vmul.f32 %v135, %v241
    %248 = vset.pattern.permute.xlu0 1
    %249 = vperm.xlu0 %248, %v219
    %v250 = vpop.permute.xlu0 %249
    %253 = vset.pattern.permute.xlu0 1
    %254 = vperm.xlu0 %253, %v220
    %v255 = vpop.permute.xlu0 %254
    %258 = vset.pattern.permute.xlu0 1
    %259 = vperm.xlu0 %258, %v221
    %v260 = vpop.permute.xlu0 %259
    %263 = vset.pattern.permute.xlu0 1
    %264 = vperm.xlu0 %263, %v222
    %v265 = vpop.permute.xlu0 %264
    %v267 = vadd.f32 %v243, %v250
    %v268 = vadd.f32 %v244, %v255
    %v269 = vadd.f32 %v245, %v260
    %v270 = vadd.f32 %v246, %v265
    %v271 = vmax.f32 %v267, 0.0
    %v272 = vmax.f32 %v268, 0.0
    %v273 = vmax.f32 %v269, 0.0
    %v274 = vmax.f32 %v270, 0.0
    %v275 = vpack.c.bf16 %v272, %v271
    %v276 = vpack.c.bf16 %v274, %v273
    %vm277 = vcmask 261120
    %v279 = vsel %vm277, %v60, 0
    %281 = vmatprep.subr.bf16.mxu0 0
    %282 = vmatpush1.bf16.msra.mxu0 %v275
    %283 = vmatprep.subr.bf16.mxu0 0
    %284 = vmatpush1.bf16.msra.mxu0 %v276
    %285 = vmatprep.subr.bf16.mxu0 0
    %286 = vmatpush1.bf16.msra.mxu0 0
    %287 = vmatprep.subr.bf16.mxu0 0
    %288 = vmatpush1.bf16.msra.mxu0 0
    %289 = vmatprep.subr.bf16.mxu0 0
    %290 = vmatpush1.bf16.msra.mxu0 0
    %291 = vmatprep.subr.bf16.mxu0 0
    %292 = vmatpush1.bf16.msra.mxu0 0
    %293 = vmatprep.subr.bf16.mxu0 0
    %294 = vmatpush1.bf16.msra.mxu0 0
    %295 = vmatprep.subr.bf16.mxu0 0
    %296 = vmatpush1.bf16.msra.mxu0 0
    %297 = vmatprep.subr.bf16.mxu0 0
    %298 = vmatpush1.bf16.msra.mxu0 0
    %299 = vmatprep.subr.bf16.mxu0 0
    %300 = vmatpush1.bf16.msra.mxu0 0
    %301 = vmatprep.subr.bf16.mxu0 0
    %302 = vmatpush1.bf16.msra.mxu0 0
    %303 = vmatprep.subr.bf16.mxu0 0
    %304 = vmatpush1.bf16.msra.mxu0 0
    %305 = vmatprep.subr.bf16.mxu0 0
    %306 = vmatpush1.bf16.msra.mxu0 0
    %307 = vmatprep.subr.bf16.mxu0 0
    %308 = vmatpush1.bf16.msra.mxu0 0
    %309 = vmatprep.subr.bf16.mxu0 0
    %310 = vmatpush1.bf16.msra.mxu0 0
    %311 = vmatprep.subr.bf16.mxu0 0
    %312 = vmatpush1.bf16.msra.mxu0 0
    %313 = vmatprep.mubr.bf16.mxu0 0
    %314 = vmatmul.mubr.bf16.gmra.mrb[0].mxu0 %v279
    %v315 = vpop.f32.mrb[0].mxu0
    %v316 = vadd.f32 0.0, %v315
    %v317 = vpop.f32.mrb[0].mxu0
    %v318 = vpop.f32.mrb[0].mxu0
    %v319 = vpop.f32.mrb[0].mxu0
    %320 = vdwg.mxu0
    %v321 = vsel %vm138, %v316, 0.0
    %322 = vadd.xlane.f32.xlu0 %v321
    %v323 = vpop.xlane.xlu0 %322
    %v324 = vmul.f32 %v323, 0.0625
    %v325 = vmul.f32 %v316, %v316
    %v326 = vsel %vm138, %v325, 0.0
    %327 = vadd.xlane.f32.xlu0 %v326
    %v328 = vpop.xlane.xlu0 %327
    %v329 = vmul.f32 %v328, 0.0625
    %v330 = vmul.f32 %v324, %v324
    %v331 = vsub.f32 %v329, %v330
    %v332 = vmax.f32 %v331, 0.0
    %v333 = vadd.f32 %v332, 1e-05
    %v334 = vrsqrt.pop %v333
    %v335 = vmul.f32 %v65, %v334
    %v336 = vmul.f32 %v324, %v335
    %338 = vrot.lane.b32.xlu0 %v336, 1
    %v339 = vpop.permute.xlu0 %338
    %v341 = vsub.f32 %v65, %v339
    %343 = vset.pattern.permute.xlu0 2
    %344 = vperm.xlu0 %343, %v335
    %v345 = vpop.permute.xlu0 %344
    %v347 = vmul.f32 %v316, %v345
    %349 = vset.pattern.permute.xlu0 3
    %350 = vperm.xlu0 %349, %v341
    %v351 = vpop.permute.xlu0 %350
    %v353 = vadd.f32 %v347, %v351
    %v354 = vmax.f32 %v353, 0.0
    %356 = vset.pattern.permute.xlu0 4
    %357 = vperm.xlu0 %356, %v65
    %v358 = vpop.permute.xlu0 %357
    %v360 = vmul.f32 %v354, %v358
    %v361 = vsel %vm138, %v360, 0.0
    %v362 = vrot.slane %v361, 4
    %v363 = vadd.f32 %v361, %v362
    %v364 = vrot.slane %v363, 2
    %v365 = vadd.f32 %v363, %v364
    %v366 = vrot.slane %v365, 1
    %v367 = vadd.f32 %v365, %v366
    %369 = vset.pattern.permute.xlu0 5
    %370 = vperm.xlu0 %369, %v66
    %v371 = vpop.permute.xlu0 %370
    %v373 = vadd.f32 %v367, %v371
    %vm374 = vcmask 122880
    %375 = vst.msk [vmem:[#allocation8] sm:$0x1] %vm374, %v373
    // Predicated region
    $region26: #{forward.1} parent=1 // pred_check
      _
    $region27: #{forward.1} parent=1 // pred_check_branch
      %377 = sbr.rel (0) target = $region29
    $region28: #{forward.1} parent=1 // pred_region
      %s379 = ssub.s32 16, 16
      %380 = vsyncadd [#allocation4], %s379
      %s382 = sshll.u32 [#allocation8], 4
      %s383 = int_to_ptr.vmem [resolvable:$true] %s382
      %385 = dma.vmem_to_hbm [thread:$0]  %s383, 16, %s3, [#allocation4]
    $region29: #{forward.1} parent=1 // pred_fallthru
      _
    // Predicated region
    $region30: #{forward.1} parent=1 // pred_check
      _
    $region31: #{forward.1} parent=1 // pred_check_branch
      %387 = sbr.rel (0) target = $region33
    $region32: #{forward.1} parent=1 // pred_region
      %388 = dma.done [#allocation4], 16
    $region33: #{forward.1} parent=1 // pred_fallthru
      _
    %389 = vsyncpa [#allocation3], 1
    %390 = vsyncpa [#allocation6], 1
    %391 = vsyncpa [#allocation4], 1

</llo_original>
